<compile_context>
chip_gen: v7x
topology: tpu7x:2x2x1
jax: 0.10.0
libtpu: 0.0.40
codegen_flags: <defaults>
</compile_context>

<pallas_src>
import functools

import jax
import jax.numpy as jnp
from jax.experimental import pallas as pl
from jax.experimental.pallas import tpu as pltpu

EPS = 1e-5
NEG_SLOPE = 0.2


def _round_up(x, m):
    return (x + m - 1) // m * m


# ----------------------------------------------------------------------------
# Fused kernel: conv-as-matmul + batch-stats + BatchNorm + LeakyReLU(0.2).
# Grid = (channel blocks j [parallel], M blocks i [arbitrary]).
# Output block index is (0, j): the whole stripe stays resident in VMEM
# across i and is written to HBM once per channel block.
# ----------------------------------------------------------------------------
def _fused_conv_bn_lrelu_kernel(p_ref, w_ref, g_ref, beta_ref, o_ref,
                                sum_ref, ssq_ref, *,
                                m_true, tile_m, n_i, inv_m, eps, slope,
                                need_mask):
    i = pl.program_id(1)

    @pl.when(i == 0)
    def _():
        sum_ref[...] = jnp.zeros_like(sum_ref)
        ssq_ref[...] = jnp.zeros_like(ssq_ref)

    # Conv hot path: one MXU matmul per M tile (bf16 inputs, f32 accumulation).
    # Conv bias intentionally omitted: it is exactly cancelled by the
    # training-mode BatchNorm mean subtraction.
    y = jnp.dot(p_ref[...], w_ref[...], preferred_element_type=jnp.float32)

    # Stash the tile into the VMEM-resident output stripe.
    row0 = pl.multiple_of(i * tile_m, tile_m)
    o_ref[pl.ds(row0, tile_m), :] = y

    # Per-channel sum / sum-of-squares; mask M-padding rows only on the last
    # tile (interior tiles are always full).
    def _accum(y_val):
        sum_ref[...] += jnp.sum(y_val, axis=0, keepdims=True)
        ssq_ref[...] += jnp.sum(y_val * y_val, axis=0, keepdims=True)

    if need_mask:
        @pl.when(i == n_i - 1)
        def _():
            row = jax.lax.broadcasted_iota(jnp.int32, (tile_m, 1), 0)
            _accum(jnp.where(row0 + row < m_true, y, 0.0))

        @pl.when(i != n_i - 1)
        def _():
            _accum(y)
    else:
        _accum(y)

    # Finalize: BatchNorm with batch statistics (biased variance) + LeakyReLU,
    # applied in place to the resident stripe, chunk by chunk.
    @pl.when(i == n_i - 1)
    def _():
        mean = sum_ref[...] * inv_m                      # (1, tile_c)
        var = ssq_ref[...] * inv_m - mean * mean         # biased (one-pass) var
        scale = g_ref[...] * jax.lax.rsqrt(var + eps)
        shift = beta_ref[...] - mean * scale

        def _norm_chunk(t, carry):
            r0 = pl.multiple_of(t * tile_m, tile_m)
            yv = o_ref[pl.ds(r0, tile_m), :] * scale + shift
            o_ref[pl.ds(r0, tile_m), :] = jnp.where(yv > 0, yv, slope * yv)
            return carry

        jax.lax.fori_loop(0, n_i, _norm_chunk, 0, unroll=n_i <= 8)


# ----------------------------------------------------------------------------
# Wrapper
# ----------------------------------------------------------------------------
def conv_block_d_forward(x_nchw, weight, bias, gamma, beta, *,
                         stride, padding, eps=EPS, negative_slope=NEG_SLOPE):
    """Forward of Conv_Block_D for NCHW float32 input (int kernel/stride/pad)."""
    del bias  # per-channel constant before training-mode BN: exactly cancelled

    x = jnp.transpose(x_nchw, (0, 2, 3, 1)).astype(jnp.float32)   # -> NHWC
    n, h, w, cin = x.shape
    cout, cin_w, kh, kw = weight.shape
    assert cin == cin_w, "channel mismatch"

    ho = (h + 2 * padding - kh) // stride + 1
    wo = (w + 2 * padding - kw) // stride + 1

    # --- XLA glue: zero pad + im2col unfold (tap-major, channel-minor) -------
    xp = jnp.pad(x, ((0, 0), (padding, padding), (padding, padding), (0, 0)))
    cols = []
    for dh in range(kh):
        for dw in range(kw):
            cols.append(xp[:, dh:dh + (ho - 1) * stride + 1:stride,
                              dw:dw + (wo - 1) * stride + 1:stride, :])
    patches = jnp.concatenate(cols, axis=-1).reshape(n * ho * wo, kh * kw * cin)

    m = n * ho * wo
    k = kh * kw * cin
    # Only pad K to a multiple of 16 (bf16 sublane tile), NOT 128: keeps the
    # im2col HBM stream ~k-sized for small-cin layers.
    kp = _round_up(k, 16)

    # Channel tiling: 256 fills the 256-wide MXU on v6e/v7x and halves patch
    # re-streaming; 128 when Cout is small so the output is not inflated.
    tile_c = 256 if cout > 128 else 128
    cp = _round_up(cout, tile_c)

    # M tiling: large tiles amortize grid-step overhead (esp. when kp is small),
    # shrunk if they would pad M excessively.
    if m <= 1024:
        tile_m = _round_up(m, 8)
    else:
        tile_m = 1024 if kp <= 1024 else 512
        while tile_m > 256 and _round_up(m, tile_m) - m > tile_m // 2:
            tile_m //= 2
    m_pad = _round_up(m, tile_m)
    n_i = m_pad // tile_m

    # Keep the VMEM-resident output stripe within budget (v7x: 64 MiB VMEM).
    if tile_c > 128 and m_pad * tile_c * 4 > 24 * 1024 * 1024:
        tile_c = 128
        cp = _round_up(cout, tile_c)
    n_j = cp // tile_c

    # bf16 on the MXU (f32 accumulation); BN / activation stay f32.
    patches_p = jnp.pad(patches.astype(jnp.bfloat16),
                        ((0, m_pad - m), (0, kp - k)))
    w_mat = jnp.transpose(weight, (2, 3, 1, 0)).reshape(k, cout)
    w_p = jnp.pad(w_mat.astype(jnp.bfloat16), ((0, kp - k), (0, cp - cout)))
    g_p = jnp.pad(gamma.astype(jnp.float32).reshape(1, -1),
                  ((0, 0), (0, cp - cout)))
    be_p = jnp.pad(beta.astype(jnp.float32).reshape(1, -1),
                   ((0, 0), (0, cp - cout)))

    kernel = functools.partial(
        _fused_conv_bn_lrelu_kernel,
        m_true=m, tile_m=tile_m, n_i=n_i, inv_m=1.0 / m, eps=eps,
        slope=negative_slope, need_mask=(m % tile_m != 0))

    out = pl.pallas_call(
        kernel,
        grid=(n_j, n_i),
        in_specs=[
            pl.BlockSpec((tile_m, kp), lambda j, i: (i, 0)),   # patches
            pl.BlockSpec((kp, tile_c), lambda j, i: (0, j)),   # weights
            pl.BlockSpec((1, tile_c), lambda j, i: (0, j)),    # gamma
            pl.BlockSpec((1, tile_c), lambda j, i: (0, j)),    # beta
        ],
        out_specs=pl.BlockSpec((m_pad, tile_c), lambda j, i: (0, j)),
        out_shape=jax.ShapeDtypeStruct((m_pad, cp), jnp.float32),
        scratch_shapes=[pltpu.VMEM((1, tile_c), jnp.float32),   # per-ch sum
                        pltpu.VMEM((1, tile_c), jnp.float32)],  # per-ch sumsq
        compiler_params=pltpu.CompilerParams(
            dimension_semantics=("parallel", "arbitrary"),
            vmem_limit_bytes=40 * 1024 * 1024),
    )(patches_p, w_p, g_p, be_p)

    out = out[:m, :cout].reshape(n, ho, wo, cout)
    return jnp.transpose(out, (0, 3, 1, 2))                # back to NCHW


# ----------------------------------------------------------------------------
# Pure-JAX reference (lax conv) for a correctness check.
# ----------------------------------------------------------------------------
def _reference_forward(x, w, b, g, be, stride, padding, eps=EPS,
                       slope=NEG_SLOPE):
    y = jax.lax.conv_general_dilated(
        x, w, window_strides=(stride, stride),
        padding=[(padding, padding), (padding, padding)],
        dimension_numbers=("NCHW", "OIHW", "NCHW"),
    ) + b.reshape(1, -1, 1, 1)
    mean = jnp.mean(y, axis=(0, 2, 3), keepdims=True)
    var = jnp.mean(jnp.square(y - mean), axis=(0, 2, 3), keepdims=True)
    y = (y - mean) * jax.lax.rsqrt(var + eps)
    y = y * g.reshape(1, -1, 1, 1) + be.reshape(1, -1, 1, 1)
    return jnp.where(y > 0, y, slope * y)


if __name__ == "__main__":
    key = jax.random.PRNGKey(0)
    kx, kw, kb, kg, kbe = jax.random.split(key, 5)

    # Conv_Block_D(input=4, output=8, kernel=3, stride=2, padding=1)
    N, CIN, H, W = 2, 4, 16, 16
    COUT, KSIZE, STRIDE, PAD = 8, 3, 2, 1

    x = jax.random.normal(kx, (N, CIN, H, W), dtype=jnp.float32)
    weight = jax.random.normal(kw, (COUT, CIN, KSIZE, KSIZE),
                               dtype=jnp.float32) * 0.1
    bias = jax.random.normal(kb, (COUT,), dtype=jnp.float32) * 0.1
    gamma = 1.0 + 0.1 * jax.random.normal(kg, (COUT,), dtype=jnp.float32)
    beta = 0.1 * jax.random.normal(kbe, (COUT,), dtype=jnp.float32)

    fwd = jax.jit(functools.partial(conv_block_d_forward,
                                    stride=STRIDE, padding=PAD))
    out = jax.block_until_ready(fwd(x, weight, bias, gamma, beta))
    ref = jax.block_until_ready(
        _reference_forward(x, weight, bias, gamma, beta, STRIDE, PAD))

    HO = (H + 2 * PAD - KSIZE) // STRIDE + 1
    WO = (W + 2 * PAD - KSIZE) // STRIDE + 1
    assert out.shape == (N, COUT, HO, WO)
    # Tolerance accounts for bf16 MXU inputs (f32 accumulation) vs f32 reference.
    assert jnp.allclose(out, ref, rtol=2e-2, atol=2e-2), "mismatch vs reference"
    print("KERNEL_OK")
</pallas_src>

<mosaic_0001>
module attributes {stable_mosaic.version = 11 : i64} {
  func.func @_fused_conv_bn_lrelu_kernel(%arg0: i32, %arg1: i32, %arg2: memref<128x48xbf16, #tpu.memory_space<vmem>>, %arg3: memref<48x128xbf16, #tpu.memory_space<vmem>>, %arg4: memref<1x128xf32, #tpu.memory_space<vmem>>, %arg5: memref<1x128xf32, #tpu.memory_space<vmem>>, %arg6: memref<128x128xf32, #tpu.memory_space<vmem>>, %arg7: memref<1x128xf32, #tpu.memory_space<vmem>>, %arg8: memref<1x128xf32, #tpu.memory_space<vmem>>) attributes {dimension_semantics = [#tpu.dimension_semantics<parallel>, #tpu.dimension_semantics<arbitrary>], iteration_bounds = array<i64: 1, 1>, scalar_prefetch = 0 : i64, scratch_operands = 2 : i64, tpu.core_type = #tpu.core_type<tc>, window_params = [{transform_indices = @transform_0, window_bounds = array<i64: 128, 48>}, {transform_indices = @transform_1, window_bounds = array<i64: 48, 128>}, {transform_indices = @transform_2, window_bounds = array<i64: 1, 128>}, {transform_indices = @transform_3, window_bounds = array<i64: 1, 128>}, {transform_indices = @transform_4, window_bounds = array<i64: 128, 128>}]} {
    %c0_i32 = arith.constant 0 : i32
    %0 = arith.cmpi eq, %arg1, %c0_i32 : i32
    %1 = arith.extui %0 : i1 to i32
    %c0_i32_0 = arith.constant 0 : i32
    %2 = arith.cmpi ne, %1, %c0_i32_0 : i32
    scf.if %2 {
      %cst_17 = arith.constant 0.000000e+00 : f32
      %24 = vector.broadcast %cst_17 : f32 to vector<1x128xf32>
      %c0_18 = arith.constant 0 : index
      %c0_19 = arith.constant 0 : index
      %25 = vector.load %arg7[%c0_18, %c0_19] : memref<1x128xf32, #tpu.memory_space<vmem>>, vector<1x128xf32>
      tpu.vector_store %arg7[%c0_18, %c0_19], %24 {strides = array<i32>} : memref<1x128xf32, #tpu.memory_space<vmem>>, vector<1x128xf32>,
      %cst_20 = arith.constant 0.000000e+00 : f32
      %26 = vector.broadcast %cst_20 : f32 to vector<1x128xf32>
      %c0_21 = arith.constant 0 : index
      %c0_22 = arith.constant 0 : index
      %27 = vector.load %arg8[%c0_21, %c0_22] : memref<1x128xf32, #tpu.memory_space<vmem>>, vector<1x128xf32>
      tpu.vector_store %arg8[%c0_21, %c0_22], %26 {strides = array<i32>} : memref<1x128xf32, #tpu.memory_space<vmem>>, vector<1x128xf32>,
    } else {
    }
    %c0 = arith.constant 0 : index
    %c0_1 = arith.constant 0 : index
    %3 = vector.load %arg2[%c0, %c0_1] : memref<128x48xbf16, #tpu.memory_space<vmem>>, vector<128x48xbf16>
    %c0_2 = arith.constant 0 : index
    %c0_3 = arith.constant 0 : index
    %4 = vector.load %arg3[%c0_2, %c0_3] : memref<48x128xbf16, #tpu.memory_space<vmem>>, vector<48x128xbf16>
    %cst = arith.constant dense<0.000000e+00> : vector<128x128xf32>
    %5 = tpu.matmul %3, %4, %cst {dimension_numbers = #tpu.dot_dimension_numbers<[1], [0], [0], [1], [0, 0, 1, 1], [], []>} : vector<128x48xbf16>, vector<48x128xbf16>, vector<128x128xf32> -> vector<128x128xf32>
    %c128_i32 = arith.constant 128 : i32
    %6 = arith.muli %arg1, %c128_i32 : i32
    %7 = tpu.assume_multiple %6, 128 : i32
    %8 = arith.index_cast %7 : i32 to index
    %c0_4 = arith.constant 0 : index
    %9 = vector.load %arg6[%8, %c0_4] : memref<128x128xf32, #tpu.memory_space<vmem>>, vector<128x128xf32>
    tpu.vector_store %arg6[%8, %c0_4], %5 {strides = array<i32>} : memref<128x128xf32, #tpu.memory_space<vmem>>, vector<128x128xf32>,
    %c0_5 = arith.constant 0 : index
    %c0_6 = arith.constant 0 : index
    %10 = vector.load %arg7[%c0_5, %c0_6] : memref<1x128xf32, #tpu.memory_space<vmem>>, vector<1x128xf32>
    %cst_7 = arith.constant dense<0.000000e+00> : vector<128xf32>
    %11 = vector.multi_reduction <add>, %5, %cst_7 [0] : vector<128x128xf32> to vector<128xf32>
    %12 = vector.shape_cast %11 : vector<128xf32> to vector<1x128xf32>
    %13 = arith.addf %10, %12 : vector<1x128xf32>
    %c0_8 = arith.constant 0 : index
    %c0_9 = arith.constant 0 : index
    %14 = vector.load %arg7[%c0_8, %c0_9] : memref<1x128xf32, #tpu.memory_space<vmem>>, vector<1x128xf32>
    tpu.vector_store %arg7[%c0_8, %c0_9], %13 {strides = array<i32>} : memref<1x128xf32, #tpu.memory_space<vmem>>, vector<1x128xf32>,
    %c0_10 = arith.constant 0 : index
    %c0_11 = arith.constant 0 : index
    %15 = vector.load %arg8[%c0_10, %c0_11] : memref<1x128xf32, #tpu.memory_space<vmem>>, vector<1x128xf32>
    %16 = arith.mulf %5, %5 : vector<128x128xf32>
    %cst_12 = arith.constant dense<0.000000e+00> : vector<128xf32>
    %17 = vector.multi_reduction <add>, %16, %cst_12 [0] : vector<128x128xf32> to vector<128xf32>
    %18 = vector.shape_cast %17 : vector<128xf32> to vector<1x128xf32>
    %19 = arith.addf %15, %18 : vector<1x128xf32>
    %c0_13 = arith.constant 0 : index
    %c0_14 = arith.constant 0 : index
    %20 = vector.load %arg8[%c0_13, %c0_14] : memref<1x128xf32, #tpu.memory_space<vmem>>, vector<1x128xf32>
    tpu.vector_store %arg8[%c0_13, %c0_14], %19 {strides = array<i32>} : memref<1x128xf32, #tpu.memory_space<vmem>>, vector<1x128xf32>,
    %c0_i32_15 = arith.constant 0 : i32
    %21 = arith.cmpi eq, %arg1, %c0_i32_15 : i32
    %22 = arith.extui %21 : i1 to i32
    %c0_i32_16 = arith.constant 0 : i32
    %23 = arith.cmpi ne, %22, %c0_i32_16 : i32
    scf.if %23 {
      %c0_17 = arith.constant 0 : index
      %c0_18 = arith.constant 0 : index
      %24 = vector.load %arg7[%c0_17, %c0_18] : memref<1x128xf32, #tpu.memory_space<vmem>>, vector<1x128xf32>
      %cst_19 = arith.constant 7.812500e-03 : f32
      %25 = vector.broadcast %cst_19 : f32 to vector<1x128xf32>
      %26 = arith.mulf %24, %25 : vector<1x128xf32>
      %c0_20 = arith.constant 0 : index
      %c0_21 = arith.constant 0 : index
      %27 = vector.load %arg8[%c0_20, %c0_21] : memref<1x128xf32, #tpu.memory_space<vmem>>, vector<1x128xf32>
      %cst_22 = arith.constant 7.812500e-03 : f32
      %28 = vector.broadcast %cst_22 : f32 to vector<1x128xf32>
      %29 = arith.mulf %27, %28 : vector<1x128xf32>
      %30 = arith.mulf %26, %26 : vector<1x128xf32>
      %31 = arith.subf %29, %30 : vector<1x128xf32>
      %c0_23 = arith.constant 0 : index
      %c0_24 = arith.constant 0 : index
      %32 = vector.load %arg4[%c0_23, %c0_24] : memref<1x128xf32, #tpu.memory_space<vmem>>, vector<1x128xf32>
      %cst_25 = arith.constant 9.99999974E-6 : f32
      %33 = vector.broadcast %cst_25 : f32 to vector<1x128xf32>
      %34 = arith.addf %31, %33 : vector<1x128xf32>
      %35 = math.rsqrt %34 : vector<1x128xf32>
      %36 = arith.mulf %32, %35 : vector<1x128xf32>
      %c0_26 = arith.constant 0 : index
      %c0_27 = arith.constant 0 : index
      %37 = vector.load %arg5[%c0_26, %c0_27] : memref<1x128xf32, #tpu.memory_space<vmem>>, vector<1x128xf32>
      %38 = arith.mulf %26, %36 : vector<1x128xf32>
      %39 = arith.subf %37, %38 : vector<1x128xf32>
      %c0_i32_28 = arith.constant 0 : i32
      %c128_i32_29 = arith.constant 128 : i32
      %40 = arith.muli %c0_i32_28, %c128_i32_29 : i32
      %41 = tpu.assume_multiple %40, 128 : i32
      %42 = arith.index_cast %41 : i32 to index
      %c0_30 = arith.constant 0 : index
      %43 = vector.load %arg6[%42, %c0_30] : memref<128x128xf32, #tpu.memory_space<vmem>>, vector<128x128xf32>
      %44 = vector.broadcast %36 : vector<1x128xf32> to vector<128x128xf32>
      %45 = arith.mulf %43, %44 : vector<128x128xf32>
      %46 = vector.broadcast %39 : vector<1x128xf32> to vector<128x128xf32>
      %47 = arith.addf %45, %46 : vector<128x128xf32>
      %cst_31 = arith.constant 0.000000e+00 : f32
      %48 = vector.broadcast %cst_31 : f32 to vector<128x128xf32>
      %49 = arith.cmpf ogt, %47, %48 : vector<128x128xf32>
      %cst_32 = arith.constant 2.000000e-01 : f32
      %50 = vector.broadcast %cst_32 : f32 to vector<128x128xf32>
      %51 = arith.mulf %50, %47 : vector<128x128xf32>
      %52 = arith.select %49, %47, %51 : vector<128x128xi1>, vector<128x128xf32>
      %53 = arith.index_cast %41 : i32 to index
      %c0_33 = arith.constant 0 : index
      %54 = vector.load %arg6[%53, %c0_33] : memref<128x128xf32, #tpu.memory_space<vmem>>, vector<128x128xf32>
      tpu.vector_store %arg6[%53, %c0_33], %52 {strides = array<i32>} : memref<128x128xf32, #tpu.memory_space<vmem>>, vector<128x128xf32>,
      %c1_i32 = arith.constant 1 : i32
    } else {
    }
    return
  }
  func.func @transform_0(%arg0: i32, %arg1: i32) -> (i32, i32) {
    %c0_i32 = arith.constant 0 : i32
    %c0_i32_0 = arith.constant 0 : i32
    return %arg1, %c0_i32 : i32, i32
  }
  func.func @transform_1(%arg0: i32, %arg1: i32) -> (i32, i32) {
    %c0_i32 = arith.constant 0 : i32
    %c0_i32_0 = arith.constant 0 : i32
    return %c0_i32, %arg0 : i32, i32
  }
  func.func @transform_2(%arg0: i32, %arg1: i32) -> (i32, i32) {
    %c0_i32 = arith.constant 0 : i32
    %c0_i32_0 = arith.constant 0 : i32
    return %c0_i32, %arg0 : i32, i32
  }
  func.func @transform_3(%arg0: i32, %arg1: i32) -> (i32, i32) {
    %c0_i32 = arith.constant 0 : i32
    %c0_i32_0 = arith.constant 0 : i32
    return %c0_i32, %arg0 : i32, i32
  }
  func.func @transform_4(%arg0: i32, %arg1: i32) -> (i32, i32) {
    %c0_i32 = arith.constant 0 : i32
    %c0_i32_0 = arith.constant 0 : i32
    return %c0_i32, %arg0 : i32, i32
  }
}

</mosaic_0001>

<llo_original>
// kernel: conv_block_d_forward.1
$region0: #{conv_block_d_forward.1}
  #allocation0 [shape = 'u32[]', space=smem, size = 0x4, offset = 0x4, fixed_abs, tag = 'smem constant byte address 0x4 - core index']
  #allocation1 [shape = 'u32[144,128]{1,0:T(1,128)}', space=vmem, size = 0x12000, scoped, tag = 'internal scratch']
  #allocation2 [shape = 'f32[1,128]{1,0:T(1,128)}', space=vmem, size = 0x200, scoped, tag = 'scratch operand']
  #allocation3 [shape = 'f32[1,128]{1,0:T(1,128)}', space=vmem, size = 0x200, scoped, tag = 'scratch operand']
  %s0 = inlined_call_operand.vmem [shape: bf16[128,48], index: 0, kind: input, shape index: {}]
  %s1 = inlined_call_operand.vmem [shape: bf16[48,128], index: 1, kind: input, shape index: {}]
  %s2 = inlined_call_operand.vmem [shape: f32[1,128], index: 2, kind: input, shape index: {}]
  %s3 = inlined_call_operand.vmem [shape: f32[1,128], index: 3, kind: input, shape index: {}]
  %s4 = inlined_call_operand.vmem [shape: f32[128,128], index: 4, kind: output, shape index: {}]
  %s5 = sld [smem:[#allocation0]]
  $region34: #{conv_block_d_forward.1} parent=0
    _
  %s7 = ssub.s32 1, %s5
  %s8 = scalar_select 0, %s7, %s5
  // Predicated region
  $region2: #{conv_block_d_forward.1} parent=0 // pred_check
    _
  $region3: #{conv_block_d_forward.1} parent=0 // pred_check_branch
    %10 = sbr.rel (0) target = $region5
  $region4: #{conv_block_d_forward.1} parent=0 // pred_region
    _
  $region5: #{conv_block_d_forward.1} parent=0 // pred_fallthru
    _
  // Predicated region
  $region6: #{conv_block_d_forward.1} parent=0 // pred_check
    _
  $region7: #{conv_block_d_forward.1} parent=0 // pred_check_branch
    %12 = sbr.rel (0) target = $region9
  $region8: #{conv_block_d_forward.1} parent=0 // pred_region
    _
  $region9: #{conv_block_d_forward.1} parent=0 // pred_fallthru
    _
  // Predicated region
  $region10: #{conv_block_d_forward.1} parent=0 // pred_check
    _
  $region11: #{conv_block_d_forward.1} parent=0 // pred_check_branch
    %14 = sbr.rel (0) target = $region13
  $region12: #{conv_block_d_forward.1} parent=0 // pred_region
    _
  $region13: #{conv_block_d_forward.1} parent=0 // pred_fallthru
    _
  // Predicated region
  $region14: #{conv_block_d_forward.1} parent=0 // pred_check
    _
  $region15: #{conv_block_d_forward.1} parent=0 // pred_check_branch
    %16 = sbr.rel (0) target = $region17
  $region16: #{conv_block_d_forward.1} parent=0 // pred_region
    _
  $region17: #{conv_block_d_forward.1} parent=0 // pred_fallthru
    _
  %p18 = scmp.eq.s32.totalorder 0, 0
  // Predicated region
  $region18: #{conv_block_d_forward.1} parent=0 // pred_check
    %p19 = pneg %p18
  $region19: #{conv_block_d_forward.1} parent=0 // pred_check_branch
    %21 = sbr.rel (%p19) target = $region21
  $region20: #{conv_block_d_forward.1} parent=0 // pred_region
    %22 = vst [vmem:[#allocation2] sm:$0x1] 0.0
    %23 = vst [vmem:[#allocation3] sm:$0x1] 0.0
  $region21: #{conv_block_d_forward.1} parent=0 // pred_fallthru
    _
  %v24 = vld [vmem:[%s0] sm:$0xf]
  %v25 = vld [vmem:[%s0 + $0x4] sm:$0xf]
  %v26 = vld [vmem:[%s0 + $0x8] sm:$0xf]
  %v27 = vld [vmem:[%s0 + $0xc] sm:$0xf]
  %v28 = vld [vmem:[%s0 + $0x10] sm:$0xf]
  %v29 = vld [vmem:[%s0 + $0x14] sm:$0xf]
  %v30 = vld [vmem:[%s0 + $0x18] sm:$0xf]
  %v31 = vld [vmem:[%s0 + $0x1c] sm:$0xf]
  %v32 = vld [vmem:[%s0 + $0x20] sm:$0xf]
  %v33 = vld [vmem:[%s0 + $0x24] sm:$0xf]
  %v34 = vld [vmem:[%s0 + $0x28] sm:$0xf]
  %v35 = vld [vmem:[%s0 + $0x2c] sm:$0xf]
  %v36 = vld [vmem:[%s0 + $0x30] sm:$0xf]
  %v37 = vld [vmem:[%s0 + $0x34] sm:$0xf]
  %v38 = vld [vmem:[%s0 + $0x38] sm:$0xf]
  %v39 = vld [vmem:[%s0 + $0x3c] sm:$0xf]
  %v40 = vld [vmem:[%s1] sm:$0xf]
  %v41 = vld [vmem:[%s1 + $0x4] sm:$0xf]
  %v42 = vld [vmem:[%s1 + $0x8] sm:$0xf]
  %v43 = vld [vmem:[%s1 + $0xc] sm:$0xf]
  %v44 = vld [vmem:[%s1 + $0x10] sm:$0xf]
  %v45 = vld [vmem:[%s1 + $0x14] sm:$0xf]
  %v62 = vunpack.c.l.b16 %v24
  %v63 = vunpack.c.l.b16 %v25
  %v64 = vunpack.c.l.b16 %v26
  %v65 = vunpack.c.l.b16 %v27
  %v66 = vunpack.c.l.b16 %v28
  %v67 = vunpack.c.l.b16 %v29
  %v68 = vunpack.c.l.b16 %v30
  %v69 = vunpack.c.l.b16 %v31
  %v70 = vunpack.c.l.b16 %v32
  %v71 = vunpack.c.l.b16 %v33
  %v72 = vunpack.c.l.b16 %v34
  %v73 = vunpack.c.l.b16 %v35
  %v74 = vunpack.c.l.b16 %v36
  %v75 = vunpack.c.l.b16 %v37
  %v76 = vunpack.c.l.b16 %v38
  %v77 = vunpack.c.l.b16 %v39
  %v78 = vpack.c.b16 %v63, %v62
  %v79 = vpack.c.b16 %v65, %v64
  %v80 = vpack.c.b16 %v67, %v66
  %v81 = vpack.c.b16 %v69, %v68
  %v82 = vpack.c.b16 %v71, %v70
  %v83 = vpack.c.b16 %v73, %v72
  %v84 = vpack.c.b16 %v75, %v74
  %v85 = vpack.c.b16 %v77, %v76
  %v92 = vunpack.c.l.b16 %v40
  %v93 = vunpack.c.l.b16 %v41
  %v94 = vunpack.c.l.b16 %v42
  %v95 = vunpack.c.l.b16 %v43
  %v96 = vunpack.c.l.b16 %v44
  %v97 = vunpack.c.l.b16 %v45
  %v98 = vpack.c.b16 %v93, %v92
  %v99 = vpack.c.b16 %v95, %v94
  %v100 = vpack.c.b16 %v97, %v96
  %vm104 = vcmask 392192
  %v106 = vsel %vm104, %v78, 0
  %v109 = vsel %vm104, %v79, 0
  %v112 = vsel %vm104, %v80, 0
  %v115 = vsel %vm104, %v81, 0
  %v118 = vsel %vm104, %v82, 0
  %v121 = vsel %vm104, %v83, 0
  %v124 = vsel %vm104, %v84, 0
  %v127 = vsel %vm104, %v85, 0
  %129 = vmatprep.subr.bf16.mxu0 0
  %130 = vmatpush1.bf16.msra.mxu0 %v98
  %131 = vmatprep.subr.bf16.mxu0 0
  %132 = vmatpush1.bf16.msra.mxu0 %v99
  %133 = vmatprep.subr.bf16.mxu0 0
  %134 = vmatpush1.bf16.msra.mxu0 %v100
  %135 = vmatprep.subr.bf16.mxu0 0
  %136 = vmatpush1.bf16.msra.mxu0 0
  %137 = vmatprep.subr.bf16.mxu0 0
  %138 = vmatpush1.bf16.msra.mxu0 0
  %139 = vmatprep.subr.bf16.mxu0 0
  %140 = vmatpush1.bf16.msra.mxu0 0
  %141 = vmatprep.subr.bf16.mxu0 0
  %142 = vmatpush1.bf16.msra.mxu0 0
  %143 = vmatprep.subr.bf16.mxu0 0
  %144 = vmatpush1.bf16.msra.mxu0 0
  %145 = vmatprep.subr.bf16.mxu0 0
  %146 = vmatpush1.bf16.msra.mxu0 0
  %147 = vmatprep.subr.bf16.mxu0 0
  %148 = vmatpush1.bf16.msra.mxu0 0
  %149 = vmatprep.subr.bf16.mxu0 0
  %150 = vmatpush1.bf16.msra.mxu0 0
  %151 = vmatprep.subr.bf16.mxu0 0
  %152 = vmatpush1.bf16.msra.mxu0 0
  %153 = vmatprep.subr.bf16.mxu0 0
  %154 = vmatpush1.bf16.msra.mxu0 0
  %155 = vmatprep.subr.bf16.mxu0 0
  %156 = vmatpush1.bf16.msra.mxu0 0
  %157 = vmatprep.subr.bf16.mxu0 0
  %158 = vmatpush1.bf16.msra.mxu0 0
  %159 = vmatprep.subr.bf16.mxu0 0
  %160 = vmatpush1.bf16.msra.mxu0 0
  %161 = vmatprep.mubr.bf16.mxu0 0
  %162 = vmatmul.mubr.bf16.gmra.mrb[0].mxu0 %v106
  %v163 = vpop.f32.mrb[0].mxu0
  %v164 = vadd.f32 0.0, %v163
  %v165 = vpop.f32.mrb[0].mxu0
  %v166 = vpop.f32.mrb[0].mxu0
  %v167 = vadd.f32 0.0, %v166
  %v168 = vpop.f32.mrb[0].mxu0
  %169 = vmatprep.mubr.bf16.mxu0 0
  %170 = vmatmul.mubr.bf16.gmra.mrb[0].mxu0 %v109
  %v171 = vpop.f32.mrb[0].mxu0
  %v172 = vadd.f32 0.0, %v171
  %v173 = vpop.f32.mrb[0].mxu0
  %v174 = vpop.f32.mrb[0].mxu0
  %v175 = vadd.f32 0.0, %v174
  %v176 = vpop.f32.mrb[0].mxu0
  %177 = vmatprep.mubr.bf16.mxu0 0
  %178 = vmatmul.mubr.bf16.gmra.mrb[0].mxu0 %v112
  %v179 = vpop.f32.mrb[0].mxu0
  %v180 = vadd.f32 0.0, %v179
  %v181 = vpop.f32.mrb[0].mxu0
  %v182 = vpop.f32.mrb[0].mxu0
  %v183 = vadd.f32 0.0, %v182
  %v184 = vpop.f32.mrb[0].mxu0
  %185 = vmatprep.mubr.bf16.mxu0 0
  %186 = vmatmul.mubr.bf16.gmra.mrb[0].mxu0 %v115
  %v187 = vpop.f32.mrb[0].mxu0
  %v188 = vadd.f32 0.0, %v187
  %v189 = vpop.f32.mrb[0].mxu0
  %v190 = vpop.f32.mrb[0].mxu0
  %v191 = vadd.f32 0.0, %v190
  %v192 = vpop.f32.mrb[0].mxu0
  %193 = vmatprep.mubr.bf16.mxu0 0
  %194 = vmatmul.mubr.bf16.gmra.mrb[0].mxu0 %v118
  %v195 = vpop.f32.mrb[0].mxu0
  %v196 = vadd.f32 0.0, %v195
  %v197 = vpop.f32.mrb[0].mxu0
  %v198 = vpop.f32.mrb[0].mxu0
  %v199 = vadd.f32 0.0, %v198
  %v200 = vpop.f32.mrb[0].mxu0
  %201 = vmatprep.mubr.bf16.mxu0 0
  %202 = vmatmul.mubr.bf16.gmra.mrb[0].mxu0 %v121
  %v203 = vpop.f32.mrb[0].mxu0
  %v204 = vadd.f32 0.0, %v203
  %v205 = vpop.f32.mrb[0].mxu0
  %v206 = vpop.f32.mrb[0].mxu0
  %v207 = vadd.f32 0.0, %v206
  %v208 = vpop.f32.mrb[0].mxu0
  %209 = vmatprep.mubr.bf16.mxu0 0
  %210 = vmatmul.mubr.bf16.gmra.mrb[0].mxu0 %v124
  %v211 = vpop.f32.mrb[0].mxu0
  %v212 = vadd.f32 0.0, %v211
  %v213 = vpop.f32.mrb[0].mxu0
  %v214 = vpop.f32.mrb[0].mxu0
  %v215 = vadd.f32 0.0, %v214
  %v216 = vpop.f32.mrb[0].mxu0
  %217 = vmatprep.mubr.bf16.mxu0 0
  %218 = vmatmul.mubr.bf16.gmra.mrb[0].mxu0 %v127
  %v219 = vpop.f32.mrb[0].mxu0
  %v220 = vadd.f32 0.0, %v219
  %v221 = vpop.f32.mrb[0].mxu0
  %v222 = vpop.f32.mrb[0].mxu0
  %v223 = vadd.f32 0.0, %v222
  %v224 = vpop.f32.mrb[0].mxu0
  %225 = vdwg.mxu0
  %s226 = smul.u32 0, 128
  %s227 = scalar_lea.vmem %s4, %s226
  %228 = vst [vmem:[%s227] sm:$0xff] %v164
  %229 = vst [vmem:[%s227 + $0x8] sm:$0xff] %v167
  %230 = vst [vmem:[%s227 + $0x10] sm:$0xff] %v172
  %231 = vst [vmem:[%s227 + $0x18] sm:$0xff] %v175
  %232 = vst [vmem:[%s227 + $0x20] sm:$0xff] %v180
  %233 = vst [vmem:[%s227 + $0x28] sm:$0xff] %v183
  %234 = vst [vmem:[%s227 + $0x30] sm:$0xff] %v188
  %235 = vst [vmem:[%s227 + $0x38] sm:$0xff] %v191
  %236 = vst [vmem:[%s227 + $0x40] sm:$0xff] %v196
  %237 = vst [vmem:[%s227 + $0x48] sm:$0xff] %v199
  %238 = vst [vmem:[%s227 + $0x50] sm:$0xff] %v204
  %239 = vst [vmem:[%s227 + $0x58] sm:$0xff] %v207
  %240 = vst [vmem:[%s227 + $0x60] sm:$0xff] %v212
  %241 = vst [vmem:[%s227 + $0x68] sm:$0xff] %v215
  %242 = vst [vmem:[%s227 + $0x70] sm:$0xff] %v220
  %243 = vst [vmem:[%s227 + $0x78] sm:$0xff] %v223
  %v244 = vld [vmem:[#allocation2] sm:$0x1]
  %v245 = vadd.f32 %v164, %v167
  %v246 = vadd.f32 %v245, %v172
  %v247 = vadd.f32 %v246, %v175
  %v248 = vadd.f32 %v247, %v180
  %v249 = vadd.f32 %v248, %v183
  %v250 = vadd.f32 %v249, %v188
  %v251 = vadd.f32 %v250, %v191
  %v252 = vadd.f32 %v251, %v196
  %v253 = vadd.f32 %v252, %v199
  %v254 = vadd.f32 %v253, %v204
  %v255 = vadd.f32 %v254, %v207
  %v256 = vadd.f32 %v255, %v212
  %v257 = vadd.f32 %v256, %v215
  %v258 = vadd.f32 %v257, %v220
  %v259 = vadd.f32 %v258, %v223
  %v260 = vrot.slane %v259, 4
  %v261 = vadd.f32 %v259, %v260
  %v262 = vrot.slane %v261, 2
  %v263 = vadd.f32 %v261, %v262
  %v264 = vrot.slane %v263, 1
  %v265 = vadd.f32 %v263, %v264
  %v266 = vadd.f32 %v244, %v265
  %267 = vst [vmem:[#allocation2] sm:$0x1] %v266
  %v268 = vld [vmem:[#allocation3] sm:$0x1]
  %v269 = vmul.f32 %v164, %v164
  %v270 = vmul.f32 %v167, %v167
  %v271 = vmul.f32 %v172, %v172
  %v272 = vmul.f32 %v175, %v175
  %v273 = vmul.f32 %v180, %v180
  %v274 = vmul.f32 %v183, %v183
  %v275 = vmul.f32 %v188, %v188
  %v276 = vmul.f32 %v191, %v191
  %v277 = vmul.f32 %v196, %v196
  %v278 = vmul.f32 %v199, %v199
  %v279 = vmul.f32 %v204, %v204
  %v280 = vmul.f32 %v207, %v207
  %v281 = vmul.f32 %v212, %v212
  %v282 = vmul.f32 %v215, %v215
  %v283 = vmul.f32 %v220, %v220
  %v284 = vmul.f32 %v223, %v223
  %v285 = vadd.f32 %v269, %v270
  %v286 = vadd.f32 %v285, %v271
  %v287 = vadd.f32 %v286, %v272
  %v288 = vadd.f32 %v287, %v273
  %v289 = vadd.f32 %v288, %v274
  %v290 = vadd.f32 %v289, %v275
  %v291 = vadd.f32 %v290, %v276
  %v292 = vadd.f32 %v291, %v277
  %v293 = vadd.f32 %v292, %v278
  %v294 = vadd.f32 %v293, %v279
  %v295 = vadd.f32 %v294, %v280
  %v296 = vadd.f32 %v295, %v281
  %v297 = vadd.f32 %v296, %v282
  %v298 = vadd.f32 %v297, %v283
  %v299 = vadd.f32 %v298, %v284
  %v300 = vrot.slane %v299, 4
  %v301 = vadd.f32 %v299, %v300
  %v302 = vrot.slane %v301, 2
  %v303 = vadd.f32 %v301, %v302
  %v304 = vrot.slane %v303, 1
  %v305 = vadd.f32 %v303, %v304
  %v306 = vadd.f32 %v268, %v305
  %307 = vst [vmem:[#allocation3] sm:$0x1] %v306
  // Predicated region
  $region22: #{conv_block_d_forward.1} parent=0 // pred_check
    %p308 = pneg %p18
  $region23: #{conv_block_d_forward.1} parent=0 // pred_check_branch
    %310 = sbr.rel (%p308) target = $region25
  $region24: #{conv_block_d_forward.1} parent=0 // pred_region
    %v311 = vld [vmem:[#allocation2] sm:$0x1]
    %v312 = vmul.f32 %v311, 0.0078125
    %v313 = vld [vmem:[#allocation3] sm:$0x1]
    %v314 = vmul.f32 %v313, 0.0078125
    %v315 = vmul.f32 %v312, %v312
    %v316 = vsub.f32 %v314, %v315
    %v317 = vld [vmem:[%s2] sm:$0x1]
    %v318 = vadd.f32 %v316, 1e-05
    %v319 = vrsqrt.pop %v318
    %v320 = vmul.f32 %v317, %v319
    %v321 = vld [vmem:[%s3] sm:$0x1]
    %v322 = vmul.f32 %v312, %v320
    %v323 = vsub.f32 %v321, %v322
    %v324 = vld [vmem:[%s4] sm:$0xff]
    %v325 = vld [vmem:[%s4 + $0x8] sm:$0xff]
    %v326 = vld [vmem:[%s4 + $0x10] sm:$0xff]
    %v327 = vld [vmem:[%s4 + $0x18] sm:$0xff]
    %v328 = vld [vmem:[%s4 + $0x20] sm:$0xff]
    %v329 = vld [vmem:[%s4 + $0x28] sm:$0xff]
    %v330 = vld [vmem:[%s4 + $0x30] sm:$0xff]
    %v331 = vld [vmem:[%s4 + $0x38] sm:$0xff]
    %v332 = vld [vmem:[%s4 + $0x40] sm:$0xff]
    %v333 = vld [vmem:[%s4 + $0x48] sm:$0xff]
    %v334 = vld [vmem:[%s4 + $0x50] sm:$0xff]
    %v335 = vld [vmem:[%s4 + $0x58] sm:$0xff]
    %v336 = vld [vmem:[%s4 + $0x60] sm:$0xff]
    %v337 = vld [vmem:[%s4 + $0x68] sm:$0xff]
    %v338 = vld [vmem:[%s4 + $0x70] sm:$0xff]
    %v339 = vld [vmem:[%s4 + $0x78] sm:$0xff]
    %v341 = vlaneseq
    %v342 = vshrl.u32 %v341, 7
    %v343 = vsub.s32 0, %v342
    %v344 = vrot.slane %v320, %v343
    %v346 = vmul.f32 %v324, %v344
    %v347 = vmul.f32 %v325, %v344
    %v348 = vmul.f32 %v326, %v344
    %v349 = vmul.f32 %v327, %v344
    %v350 = vmul.f32 %v328, %v344
    %v351 = vmul.f32 %v329, %v344
    %v352 = vmul.f32 %v330, %v344
    %v353 = vmul.f32 %v331, %v344
    %v354 = vmul.f32 %v332, %v344
    %v355 = vmul.f32 %v333, %v344
    %v356 = vmul.f32 %v334, %v344
    %v357 = vmul.f32 %v335, %v344
    %v358 = vmul.f32 %v336, %v344
    %v359 = vmul.f32 %v337, %v344
    %v360 = vmul.f32 %v338, %v344
    %v361 = vmul.f32 %v339, %v344
    %v363 = vlaneseq
    %v364 = vshrl.u32 %v363, 7
    %v365 = vsub.s32 0, %v364
    %v366 = vrot.slane %v323, %v365
    %v368 = vadd.f32 %v346, %v366
    %v369 = vadd.f32 %v347, %v366
    %v370 = vadd.f32 %v348, %v366
    %v371 = vadd.f32 %v349, %v366
    %v372 = vadd.f32 %v350, %v366
    %v373 = vadd.f32 %v351, %v366
    %v374 = vadd.f32 %v352, %v366
    %v375 = vadd.f32 %v353, %v366
    %v376 = vadd.f32 %v354, %v366
    %v377 = vadd.f32 %v355, %v366
    %v378 = vadd.f32 %v356, %v366
    %v379 = vadd.f32 %v357, %v366
    %v380 = vadd.f32 %v358, %v366
    %v381 = vadd.f32 %v359, %v366
    %v382 = vadd.f32 %v360, %v366
    %v383 = vadd.f32 %v361, %v366
    %vm384 = vcmp.gt.f32.partialorder %v368, 0.0
    %vm385 = vcmp.gt.f32.partialorder %v369, 0.0
    %vm386 = vcmp.gt.f32.partialorder %v370, 0.0
    %vm387 = vcmp.gt.f32.partialorder %v371, 0.0
    %vm388 = vcmp.gt.f32.partialorder %v372, 0.0
    %vm389 = vcmp.gt.f32.partialorder %v373, 0.0
    %vm390 = vcmp.gt.f32.partialorder %v374, 0.0
    %vm391 = vcmp.gt.f32.partialorder %v375, 0.0
    %vm392 = vcmp.gt.f32.partialorder %v376, 0.0
    %vm393 = vcmp.gt.f32.partialorder %v377, 0.0
    %vm394 = vcmp.gt.f32.partialorder %v378, 0.0
    %vm395 = vcmp.gt.f32.partialorder %v379, 0.0
    %vm396 = vcmp.gt.f32.partialorder %v380, 0.0
    %vm397 = vcmp.gt.f32.partialorder %v381, 0.0
    %vm398 = vcmp.gt.f32.partialorder %v382, 0.0
    %vm399 = vcmp.gt.f32.partialorder %v383, 0.0
    %v400 = vmul.f32 %v368, 0.2
    %v401 = vmul.f32 %v369, 0.2
    %v402 = vmul.f32 %v370, 0.2
    %v403 = vmul.f32 %v371, 0.2
    %v404 = vmul.f32 %v372, 0.2
    %v405 = vmul.f32 %v373, 0.2
    %v406 = vmul.f32 %v374, 0.2
    %v407 = vmul.f32 %v375, 0.2
    %v408 = vmul.f32 %v376, 0.2
    %v409 = vmul.f32 %v377, 0.2
    %v410 = vmul.f32 %v378, 0.2
    %v411 = vmul.f32 %v379, 0.2
    %v412 = vmul.f32 %v380, 0.2
    %v413 = vmul.f32 %v381, 0.2
    %v414 = vmul.f32 %v382, 0.2
    %v415 = vmul.f32 %v383, 0.2
    %v416 = vsel %vm384, %v368, %v400
    %v417 = vsel %vm385, %v369, %v401
    %v418 = vsel %vm386, %v370, %v402
    %v419 = vsel %vm387, %v371, %v403
    %v420 = vsel %vm388, %v372, %v404
    %v421 = vsel %vm389, %v373, %v405
    %v422 = vsel %vm390, %v374, %v406
    %v423 = vsel %vm391, %v375, %v407
    %v424 = vsel %vm392, %v376, %v408
    %v425 = vsel %vm393, %v377, %v409
    %v426 = vsel %vm394, %v378, %v410
    %v427 = vsel %vm395, %v379, %v411
    %v428 = vsel %vm396, %v380, %v412
    %v429 = vsel %vm397, %v381, %v413
    %v430 = vsel %vm398, %v382, %v414
    %v431 = vsel %vm399, %v383, %v415
    %432 = vst [vmem:[%s4] sm:$0xff] %v416
    %433 = vst [vmem:[%s4 + $0x8] sm:$0xff] %v417
    %434 = vst [vmem:[%s4 + $0x10] sm:$0xff] %v418
    %435 = vst [vmem:[%s4 + $0x18] sm:$0xff] %v419
    %436 = vst [vmem:[%s4 + $0x20] sm:$0xff] %v420
    %437 = vst [vmem:[%s4 + $0x28] sm:$0xff] %v421
    %438 = vst [vmem:[%s4 + $0x30] sm:$0xff] %v422
    %439 = vst [vmem:[%s4 + $0x38] sm:$0xff] %v423
    %440 = vst [vmem:[%s4 + $0x40] sm:$0xff] %v424
    %441 = vst [vmem:[%s4 + $0x48] sm:$0xff] %v425
    %442 = vst [vmem:[%s4 + $0x50] sm:$0xff] %v426
    %443 = vst [vmem:[%s4 + $0x58] sm:$0xff] %v427
    %444 = vst [vmem:[%s4 + $0x60] sm:$0xff] %v428
    %445 = vst [vmem:[%s4 + $0x68] sm:$0xff] %v429
    %446 = vst [vmem:[%s4 + $0x70] sm:$0xff] %v430
    %447 = vst [vmem:[%s4 + $0x78] sm:$0xff] %v431
  $region25: #{conv_block_d_forward.1} parent=0 // pred_fallthru
    _
  // Predicated region
  $region26: #{conv_block_d_forward.1} parent=0 // pred_check
    _
  $region27: #{conv_block_d_forward.1} parent=0 // pred_check_branch
    %449 = sbr.rel (0) target = $region29
  $region28: #{conv_block_d_forward.1} parent=0 // pred_region
    _
  $region29: #{conv_block_d_forward.1} parent=0 // pred_fallthru
    _
  // Predicated region
  $region30: #{conv_block_d_forward.1} parent=0 // pred_check
    _
  $region31: #{conv_block_d_forward.1} parent=0 // pred_check_branch
    %451 = sbr.rel (0) target = $region33
  $region32: #{conv_block_d_forward.1} parent=0 // pred_region
    _
  $region33: #{conv_block_d_forward.1} parent=0 // pred_fallthru
    _

</llo_original>
